<compile_context>
chip_gen: v5e
topology: v5e:2x2
jax: 0.10.0
libtpu: 0.0.40
codegen_flags: <defaults>
</compile_context>

<pallas_src>
import functools
import math

import jax
import jax.numpy as jnp
from jax.experimental import pallas as pl
from jax.experimental.pallas import tpu as pltpu


# ---------------------------------------------------------------------------
# Layout / block-size helpers
# ---------------------------------------------------------------------------
def _fold_factors(T, C):
    """Fold (T, C) -> (T//f, f*C) so the lane dim is a multiple of 128 when T
    allows.  f is always a power of two (128 is)."""
    f = 128 // math.gcd(C, 128)
    if f > 1 and T % f == 0:
        return f, T // f, f * C
    return 1, T, C


def _pad_up(n, m):
    return ((n + m - 1) // m) * m


def _pick_block_batch(B, Tk, L, itemsize, *, target_x_bytes=4 << 20,
                      budget_bytes=36 << 20, min_steps=4):
    """Largest divisor bb of B such that the padded, double-buffered VMEM
    footprint of one grid step fits the budget, the x block stays near the
    2-4 MiB sweet spot, and the grid keeps pipeline depth (preferring an even
    step count for the 2-TensorCore v7x)."""
    pad_l = _pad_up(L, 128)
    sub = {4: 8, 2: 16, 1: 32}.get(itemsize, 8)
    pad_t_in = _pad_up(Tk, sub)
    pad_t_f32 = _pad_up(Tk, 8)
    x_bytes = pad_t_in * pad_l * itemsize            # one x block at bb == 1
    f32_bytes = pad_t_f32 * pad_l * 4                # one full-block f32 temp
    per_bb = 4 * x_bytes + 3 * f32_bytes             # 2x in + 2x out + ~3 temps
    cap = max(1, min(target_x_bytes // max(x_bytes, 1),
                     budget_bytes // max(per_bb, 1)))
    cap = min(cap, B, max(1, B // min(min_steps, B)))
    best, best_even = 1, None
    for d in range(1, int(cap) + 1):
        if B % d == 0:
            best = d
            if (B // d) % 2 == 0:
                best_even = d
    if best_even is not None and 2 * best_even >= best:
        return best_even          # keep the grid even unless it costs > 2x in bb
    return best


# ---------------------------------------------------------------------------
# Kernels
# ---------------------------------------------------------------------------
def _channel_tree_sum(s, group):
    """s: (bb, 1, L) partial sums per (fold-group, channel), L = f*group with f
    a power of two.  Returns the per-channel total, replicated in every fold
    group, via a log2(f)-step circular-roll tree (XLU lane rotates)."""
    L = s.shape[-1]
    shift = group
    while shift < L:
        s = s + pltpu.roll(s, shift=shift, axis=2)
        shift *= 2
    return s


def _revin_norm_kernel(x_ref, gamma_ref, beta_ref, y_ref, stats_ref, *,
                       eps, group, inv_t, inv_tm1, affine):
    x = x_ref[...].astype(jnp.float32)                          # (bb, Tk, L)

    # Per-channel mean over the (possibly folded) time axis.
    mean = _channel_tree_sum(jnp.sum(x, axis=1, keepdims=True), group)
    mean = mean * jnp.float32(inv_t)                            # (bb, 1, L)

    # Two-pass (numerically stable) unbiased variance -> torch.std semantics.
    d = x - mean
    var = _channel_tree_sum(jnp.sum(d * d, axis=1, keepdims=True), group)
    std = jnp.sqrt(var * jnp.float32(inv_tm1)) + jnp.float32(eps)

    inv_std = pl.reciprocal(std, approx=False)                  # exact divide
    if affine:
        scale = gamma_ref[...].astype(jnp.float32) * inv_std
        offs = beta_ref[...].astype(jnp.float32) - mean * scale
    else:
        scale = inv_std
        offs = -mean * inv_std

    y_ref[...] = (x * scale + offs).astype(y_ref.dtype)
    stats_ref[...] = jnp.concatenate([mean, std], axis=1).astype(stats_ref.dtype)


def _revin_denorm_kernel(x_ref, scale_ref, shift_ref, y_ref):
    # Pure fused multiply-add; per-batch scale/shift precomputed in the wrapper.
    y_ref[...] = (x_ref[...].astype(jnp.float32) * scale_ref[...]
                  + shift_ref[...]).astype(y_ref.dtype)


# ---------------------------------------------------------------------------
# Wrappers
# ---------------------------------------------------------------------------
_COMPILER_PARAMS = pltpu.CompilerParams(
    dimension_semantics=("parallel",),   # batch grid axis shards across TCs (v7x)
    vmem_limit_bytes=48 << 20,           # safe on v7x (64 MiB phys), ample on v5e/v6e
)


def revin_norm(x, gamma, beta, *, eps=1e-5, affine=True):
    """mode == 'norm': returns (y, mean, std) with mean/std of shape (B, 1, C)."""
    B, T, C = x.shape
    f, Tk, L = _fold_factors(T, C)
    xk = x.reshape(B, Tk, L) if f > 1 else x

    if gamma is None:
        gamma = jnp.ones((1, 1, C), jnp.float32)
    if beta is None:
        beta = jnp.zeros((1, 1, C), jnp.float32)
    g32 = jnp.asarray(gamma, jnp.float32).reshape(1, 1, C)
    b32 = jnp.asarray(beta, jnp.float32).reshape(1, 1, C)
    if f > 1:
        g32 = jnp.tile(g32, (1, 1, f))
        b32 = jnp.tile(b32, (1, 1, f))

    itemsize = jnp.dtype(x.dtype).itemsize
    bb = _pick_block_batch(B, Tk, L, itemsize)
    grid = (B // bb,)

    kernel = functools.partial(
        _revin_norm_kernel, eps=float(eps), group=C,
        inv_t=1.0 / T, inv_tm1=1.0 / max(T - 1, 1), affine=affine)

    cost = pl.CostEstimate(
        flops=6 * B * T * C,
        transcendentals=2 * B * C,
        bytes_accessed=int(2 * B * T * C * itemsize + 2 * B * L * 4 + 2 * L * 4))

    yk, stats = pl.pallas_call(
        kernel,
        out_shape=(
            jax.ShapeDtypeStruct((B, Tk, L), x.dtype),
            jax.ShapeDtypeStruct((B, 2, L), jnp.float32),
        ),
        grid_spec=pltpu.PrefetchScalarGridSpec(
            num_scalar_prefetch=0,
            grid=grid,
            in_specs=[
                pl.BlockSpec((bb, Tk, L), lambda b: (b, 0, 0)),
                pl.BlockSpec((1, 1, L), lambda b: (0, 0, 0)),   # gamma: resident
                pl.BlockSpec((1, 1, L), lambda b: (0, 0, 0)),   # beta:  resident
            ],
            out_specs=[
                pl.BlockSpec((bb, Tk, L), lambda b: (b, 0, 0)),
                pl.BlockSpec((bb, 2, L), lambda b: (b, 0, 0)),  # packed mean/std
            ],
        ),
        compiler_params=_COMPILER_PARAMS,
        cost_estimate=cost,
    )(xk, g32, b32)

    y = yk.reshape(B, T, C) if f > 1 else yk
    mean = stats[:, 0:1, :C]
    std = stats[:, 1:2, :C]
    return y, mean, std


def revin_denorm(x, mean, std, gamma, beta, *, eps=1e-5, affine=True):
    """mode == 'denorm': returns y. mean/std must be (B, 1, C) from revin_norm."""
    B, T, C = x.shape
    f, Tk, L = _fold_factors(T, C)

    mean32 = jnp.asarray(mean, jnp.float32).reshape(B, 1, C)
    std32 = jnp.asarray(std, jnp.float32).reshape(B, 1, C)
    if affine:
        inv_g = 1.0 / (jnp.asarray(gamma, jnp.float32).reshape(1, 1, C) + eps)
        scale = std32 * inv_g
        shift = mean32 - jnp.asarray(beta, jnp.float32).reshape(1, 1, C) * scale
    else:
        scale = std32
        shift = mean32

    if f > 1:
        scale = jnp.tile(scale, (1, 1, f))
        shift = jnp.tile(shift, (1, 1, f))
        xk = x.reshape(B, Tk, L)
    else:
        xk = x

    itemsize = jnp.dtype(x.dtype).itemsize
    bb = _pick_block_batch(B, Tk, L, itemsize)
    grid = (B // bb,)

    cost = pl.CostEstimate(
        flops=2 * B * T * C,
        transcendentals=0,
        bytes_accessed=int(2 * B * T * C * itemsize + 2 * B * L * 4))

    yk = pl.pallas_call(
        _revin_denorm_kernel,
        out_shape=jax.ShapeDtypeStruct((B, Tk, L), x.dtype),
        grid_spec=pltpu.PrefetchScalarGridSpec(
            num_scalar_prefetch=0,
            grid=grid,
            in_specs=[
                pl.BlockSpec((bb, Tk, L), lambda b: (b, 0, 0)),
                pl.BlockSpec((bb, 1, L), lambda b: (b, 0, 0)),
                pl.BlockSpec((bb, 1, L), lambda b: (b, 0, 0)),
            ],
            out_specs=pl.BlockSpec((bb, Tk, L), lambda b: (b, 0, 0)),
        ),
        compiler_params=_COMPILER_PARAMS,
        cost_estimate=cost,
    )(xk, scale, shift)

    return yk.reshape(B, T, C) if f > 1 else yk


# ---------------------------------------------------------------------------
# Pure-JAX reference (mirrors the PyTorch module)
# ---------------------------------------------------------------------------
def _ref_norm(x, gamma, beta, eps=1e-5, affine=True):
    mean = jnp.mean(x, axis=1, keepdims=True)
    std = jnp.std(x, axis=1, keepdims=True, ddof=1) + eps
    y = (x - mean) / std
    if affine:
        y = y * gamma + beta
    return y, mean, std


def _ref_denorm(x, mean, std, gamma, beta, eps=1e-5, affine=True):
    y = (x - beta) / (gamma + eps) if affine else x
    return y * std + mean


def _check(x, gamma, beta, eps, affine, atol=1e-5, rtol=1e-5):
    y, mean, std = revin_norm(x, gamma, beta, eps=eps, affine=affine)
    x_rec = revin_denorm(y, mean, std, gamma, beta, eps=eps, affine=affine)
    jax.block_until_ready((y, mean, std, x_rec))

    y_ref, mean_ref, std_ref = _ref_norm(x, gamma, beta, eps, affine)
    x_rec_ref = _ref_denorm(y_ref, mean_ref, std_ref, gamma, beta, eps, affine)

    assert jnp.allclose(y, y_ref, atol=atol, rtol=rtol)
    assert jnp.allclose(mean, mean_ref, atol=atol, rtol=rtol)
    assert jnp.allclose(std, std_ref, atol=atol, rtol=rtol)
    assert jnp.allclose(x_rec, x_rec_ref, atol=atol, rtol=rtol)
    assert jnp.allclose(x_rec, x, atol=1e-4, rtol=1e-4)


# ---------------------------------------------------------------------------
if __name__ == "__main__":
    key = jax.random.PRNGKey(0)
    eps = 1e-5

    # Main case: lane-dense fold path (C=32, f=4 -> folded lanes = 128).
    B, T, C = 8, 16, 32
    k1, k2 = jax.random.split(key)
    x = jax.random.normal(k1, (B, T, C), dtype=jnp.float32)
    gamma = jnp.ones((1, 1, C), dtype=jnp.float32)   # RevIN.__init__: ones
    beta = jnp.zeros((1, 1, C), dtype=jnp.float32)   # RevIN.__init__: zeros
    _check(x, gamma, beta, eps, affine=True)
    _check(x, None, None, eps, affine=False)

    # Fallback path: T not divisible by the fold factor (no lane fold).
    B2, T2, C2 = 4, 10, 32
    x2 = jax.random.normal(k2, (B2, T2, C2), dtype=jnp.float32)
    gamma2 = jnp.ones((1, 1, C2), dtype=jnp.float32)
    beta2 = jnp.zeros((1, 1, C2), dtype=jnp.float32)
    _check(x2, gamma2, beta2, eps, affine=True)

    print("KERNEL_OK")
</pallas_src>

<mosaic_0001>
module attributes {stable_mosaic.version = 11 : i64} {
  func.func @_revin_norm_kernel(%arg0: i32, %arg1: memref<2x4x128xf32, #tpu.memory_space<vmem>>, %arg2: memref<1x1x128xf32, #tpu.memory_space<vmem>>, %arg3: memref<1x1x128xf32, #tpu.memory_space<vmem>>, %arg4: memref<2x4x128xf32, #tpu.memory_space<vmem>>, %arg5: memref<2x2x128xf32, #tpu.memory_space<vmem>>) attributes {dimension_semantics = [#tpu.dimension_semantics<parallel>], iteration_bounds = array<i64: 4>, scalar_prefetch = 0 : i64, scratch_operands = 0 : i64, tpu.core_type = #tpu.core_type<tc>, window_params = [{transform_indices = @transform_0, window_bounds = array<i64: 2, 4, 128>}, {pipeline_mode = #tpu.pipeline_mode<synchronous>, transform_indices = @transform_1, window_bounds = array<i64: 1, 1, 128>}, {pipeline_mode = #tpu.pipeline_mode<synchronous>, transform_indices = @transform_2, window_bounds = array<i64: 1, 1, 128>}, {transform_indices = @transform_3, window_bounds = array<i64: 2, 4, 128>}, {transform_indices = @transform_4, window_bounds = array<i64: 2, 2, 128>}]} {
    %c0 = arith.constant 0 : index
    %c0_0 = arith.constant 0 : index
    %c0_1 = arith.constant 0 : index
    %0 = vector.load %arg1[%c0, %c0_0, %c0_1] : memref<2x4x128xf32, #tpu.memory_space<vmem>>, vector<2x4x128xf32>
    %cst = arith.constant dense<0.000000e+00> : vector<2x128xf32>
    %1 = vector.multi_reduction <add>, %0, %cst [1] : vector<2x4x128xf32> to vector<2x128xf32>
    %2 = vector.shape_cast %1 : vector<2x128xf32> to vector<2x1x128xf32>
    %c32_i32 = arith.constant 32 : i32
    %3 = tpu.dynamic_rotate %2 by %c32_i32 dim 2 : vector<2x1x128xf32>, i32 -> vector<2x1x128xf32>
    %4 = arith.addf %2, %3 : vector<2x1x128xf32>
    %c64_i32 = arith.constant 64 : i32
    %5 = tpu.dynamic_rotate %4 by %c64_i32 dim 2 : vector<2x1x128xf32>, i32 -> vector<2x1x128xf32>
    %6 = arith.addf %4, %5 : vector<2x1x128xf32>
    %cst_2 = arith.constant 6.250000e-02 : f32
    %7 = vector.broadcast %cst_2 : f32 to vector<2x1x128xf32>
    %8 = arith.mulf %6, %7 : vector<2x1x128xf32>
    %9 = vector.broadcast %8 : vector<2x1x128xf32> to vector<2x4x128xf32>
    %10 = arith.subf %0, %9 : vector<2x4x128xf32>
    %11 = arith.mulf %10, %10 : vector<2x4x128xf32>
    %cst_3 = arith.constant dense<0.000000e+00> : vector<2x128xf32>
    %12 = vector.multi_reduction <add>, %11, %cst_3 [1] : vector<2x4x128xf32> to vector<2x128xf32>
    %13 = vector.shape_cast %12 : vector<2x128xf32> to vector<2x1x128xf32>
    %c32_i32_4 = arith.constant 32 : i32
    %14 = tpu.dynamic_rotate %13 by %c32_i32_4 dim 2 : vector<2x1x128xf32>, i32 -> vector<2x1x128xf32>
    %15 = arith.addf %13, %14 : vector<2x1x128xf32>
    %c64_i32_5 = arith.constant 64 : i32
    %16 = tpu.dynamic_rotate %15 by %c64_i32_5 dim 2 : vector<2x1x128xf32>, i32 -> vector<2x1x128xf32>
    %17 = arith.addf %15, %16 : vector<2x1x128xf32>
    %cst_6 = arith.constant 0.0666666701 : f32
    %18 = vector.broadcast %cst_6 : f32 to vector<2x1x128xf32>
    %19 = arith.mulf %17, %18 : vector<2x1x128xf32>
    %20 = math.sqrt %19 : vector<2x1x128xf32>
    %cst_7 = arith.constant 9.99999974E-6 : f32
    %21 = vector.broadcast %cst_7 : f32 to vector<2x1x128xf32>
    %22 = arith.addf %20, %21 : vector<2x1x128xf32>
    %23 = tpu.reciprocal %22 : vector<2x1x128xf32> -> vector<2x1x128xf32>
    %c0_8 = arith.constant 0 : index
    %c0_9 = arith.constant 0 : index
    %c0_10 = arith.constant 0 : index
    %24 = vector.load %arg2[%c0_8, %c0_9, %c0_10] : memref<1x1x128xf32, #tpu.memory_space<vmem>>, vector<1x1x128xf32>
    %25 = vector.broadcast %24 : vector<1x1x128xf32> to vector<2x1x128xf32>
    %26 = arith.mulf %25, %23 : vector<2x1x128xf32>
    %c0_11 = arith.constant 0 : index
    %c0_12 = arith.constant 0 : index
    %c0_13 = arith.constant 0 : index
    %27 = vector.load %arg3[%c0_11, %c0_12, %c0_13] : memref<1x1x128xf32, #tpu.memory_space<vmem>>, vector<1x1x128xf32>
    %28 = arith.mulf %8, %26 : vector<2x1x128xf32>
    %29 = vector.broadcast %27 : vector<1x1x128xf32> to vector<2x1x128xf32>
    %30 = arith.subf %29, %28 : vector<2x1x128xf32>
    %31 = vector.broadcast %26 : vector<2x1x128xf32> to vector<2x4x128xf32>
    %32 = arith.mulf %0, %31 : vector<2x4x128xf32>
    %33 = vector.broadcast %30 : vector<2x1x128xf32> to vector<2x4x128xf32>
    %34 = arith.addf %32, %33 : vector<2x4x128xf32>
    %c0_14 = arith.constant 0 : index
    %c0_15 = arith.constant 0 : index
    %c0_16 = arith.constant 0 : index
    %35 = vector.load %arg4[%c0_14, %c0_15, %c0_16] : memref<2x4x128xf32, #tpu.memory_space<vmem>>, vector<2x4x128xf32>
    tpu.vector_store %arg4[%c0_14, %c0_15, %c0_16], %34 {strides = array<i32>} : memref<2x4x128xf32, #tpu.memory_space<vmem>>, vector<2x4x128xf32>,
    %36 = tpu.concatenate %8, %22 in 1 : vector<2x1x128xf32>, vector<2x1x128xf32> -> vector<2x2x128xf32>
    %c0_17 = arith.constant 0 : index
    %c0_18 = arith.constant 0 : index
    %c0_19 = arith.constant 0 : index
    %37 = vector.load %arg5[%c0_17, %c0_18, %c0_19] : memref<2x2x128xf32, #tpu.memory_space<vmem>>, vector<2x2x128xf32>
    tpu.vector_store %arg5[%c0_17, %c0_18, %c0_19], %36 {strides = array<i32>} : memref<2x2x128xf32, #tpu.memory_space<vmem>>, vector<2x2x128xf32>,
    return
  }
  func.func @transform_0(%arg0: i32) -> (i32, i32, i32) {
    %c0_i32 = arith.constant 0 : i32
    %c0_i32_0 = arith.constant 0 : i32
    %c0_i32_1 = arith.constant 0 : i32
    return %arg0, %c0_i32, %c0_i32_0 : i32, i32, i32
  }
  func.func @transform_1(%arg0: i32) -> (i32, i32, i32) {
    %c0_i32 = arith.constant 0 : i32
    %c0_i32_0 = arith.constant 0 : i32
    %c0_i32_1 = arith.constant 0 : i32
    %c0_i32_2 = arith.constant 0 : i32
    return %c0_i32, %c0_i32_0, %c0_i32_1 : i32, i32, i32
  }
  func.func @transform_2(%arg0: i32) -> (i32, i32, i32) {
    %c0_i32 = arith.constant 0 : i32
    %c0_i32_0 = arith.constant 0 : i32
    %c0_i32_1 = arith.constant 0 : i32
    %c0_i32_2 = arith.constant 0 : i32
    return %c0_i32, %c0_i32_0, %c0_i32_1 : i32, i32, i32
  }
  func.func @transform_3(%arg0: i32) -> (i32, i32, i32) {
    %c0_i32 = arith.constant 0 : i32
    %c0_i32_0 = arith.constant 0 : i32
    %c0_i32_1 = arith.constant 0 : i32
    return %arg0, %c0_i32, %c0_i32_0 : i32, i32, i32
  }
  func.func @transform_4(%arg0: i32) -> (i32, i32, i32) {
    %c0_i32 = arith.constant 0 : i32
    %c0_i32_0 = arith.constant 0 : i32
    %c0_i32_1 = arith.constant 0 : i32
    return %arg0, %c0_i32, %c0_i32_0 : i32, i32, i32
  }
}

</mosaic_0001>

<llo_original>
// kernel: tpu_custom_call.1
$region0: #{tpu_custom_call.1}
  #allocation0 [shape = 'u32[]', space=smem, size = 0x4, offset = 0x4, fixed_abs, tag = 'smem constant byte address 0x4 - core index']
  #allocation1 [shape = 'u32[72,128]{1,0:T(1,128)}', space=vmem, size = 0x9000, scoped, tag = 'internal scratch']
  %s0 = inlined_call_operand.hbm [shape: f32[8,4,128], index: 0, kind: input, shape index: {}]
  %s1 = inlined_call_operand.hbm [shape: f32[1,1,128], index: 1, kind: input, shape index: {}]
  %s2 = inlined_call_operand.vmem [shape: f32[1,1,128], index: 2, kind: input, shape index: {}]
  %s3 = inlined_call_operand.hbm [shape: f32[8,4,128], index: 3, kind: output, shape index: {0}]
  %s4 = inlined_call_operand.hbm [shape: f32[8,2,128], index: 4, kind: output, shape index: {1}]
  %5 = xla_tuple %s3, %s4
  %s6 = sld [smem:[#allocation0]]
  $region61: #{tpu_custom_call.1} parent=0
    _
  %s8 = ssub.s32 1, %s6
  %s9 = scalar_select 0, %s8, %s6
  $region1: #{tpu_custom_call.1} parent=0
    #allocation2 [shape = 'u8[8192]{0}', space=vmem, size = 0x2000, scoped, tag = 'input window, operand 0']
    #allocation3 [shape = 's32[2]{0}', space=sflag, size = 0x8, scoped, tag = 'scoped memory for tpu_custom_call.1']
    #allocation4 [shape = 's32[2]{0}', space=sflag, size = 0x8, scoped, tag = 'scoped memory for tpu_custom_call.1']
    #allocation5 [shape = 'u8[512]{0}', space=vmem, size = 0x400, scoped, tag = 'input window, operand 1, single buffered']
    #allocation6 [shape = 's32[1]{0}', space=sflag, size = 0x4, scoped, tag = 'scoped memory for tpu_custom_call.1']
    #allocation7 [shape = 'u8[8192]{0}', space=vmem, size = 0x2000, scoped, tag = 'output window, operand 0']
    #allocation8 [shape = 'u8[4096]{0}', space=vmem, size = 0x1000, scoped, tag = 'output window, operand 1']
    #allocation9 [shape = 's32[2]{0}', space=sflag, size = 0x8, scoped, tag = 'scoped memory for tpu_custom_call.1']
    %10 = vsyncpa [#allocation3], 0
    %s11 = scalar_lea.sflag [#allocation3], 1
    %12 = vsyncpa %s11, 0
    %13 = vsyncpa [#allocation6], 0
    %14 = vsyncpa [#allocation4], 0
    %s15 = scalar_lea.sflag [#allocation4], 1
    %16 = vsyncpa %s15, 0
    %17 = vsyncpa [#allocation9], 0
    %s18 = scalar_lea.sflag [#allocation9], 1
    %19 = vsyncpa %s18, 0
    loop: start=0, step=1, limit=6
    $region2: #{tpu_custom_call.1} parent=1 // loop_pre_header
      _
    $region3: #{tpu_custom_call.1} parent=1 // loop_header
      %s21 = sphi 0, %s25
      %p22 = scmp.ge.s32.totalorder %s21, 6
      %s31 = sphi 0, %s33
      %s34 = sphi 0, %s31
      %s35 = sphi 0, %s34
      %s51 = sphi 0, %s35
      %s55 = sphi 0, %s55
      %s57 = sphi 0, %s55
      %s58 = sphi 0, %s57
      %s72 = sphi 0, %s58
      %s76 = sphi 0, %s76
      %s78 = sphi 0, %s76
      %s79 = sphi 0, %s78
      %s93 = sphi 0, %s79
      %s99 = sphi 0, %s101
      %s102 = sphi 0, %s99
      %s103 = sphi 0, %s102
      %s119 = sphi 0, %s103
      %s125 = sphi 0, %s127
      %s128 = sphi 0, %s125
      %s129 = sphi 0, %s128
      %s145 = sphi 0, %s129
    $region4: #{tpu_custom_call.1} parent=1 // loop_header_branch
      %24 = sbr.rel (%p22) target = $region8
    $region5: #{tpu_custom_call.1} parent=1 // loop_body
      %s26 = ssub.s32 %s21, 1
      %s27 = ssub.s32 %s21, 2
      %s28 = sadd.s32 %s21, 1
      %s29 = ssub.s32 %s21, %s28
      %p30 = scmp.eq.s32.totalorder %s29, 0
      %s32 = sadd.s32 %s31, 1
      %s33 = scalar_select %p30, %s31, %s32
      %p36 = pneg %p30
      %p37 = scmp.eq.s32.totalorder %s21, 3
      %p38 = por %p36, %p37
      %p39 = scmp.ne.s32.totalorder %s31, %s34
      %p40 = scmp.eq.s32.totalorder %s21, 0
      %p41 = por %p39, %p40
      %p42 = scmp.ne.s32.totalorder %s31, %s34
      %p43 = scmp.eq.s32.totalorder %s26, 3
      %p44 = por %p42, %p43
      %p45 = scmp.ne.s32.totalorder %s34, %s35
      %p46 = scmp.eq.s32.totalorder %s26, 0
      %p47 = por %p45, %p46
      %p48 = scmp.ne.s32.totalorder %s34, %s35
      %p49 = scmp.eq.s32.totalorder %s27, 3
      %p50 = por %p48, %p49
      %p52 = scmp.ne.s32.totalorder %s35, %s51
      %p53 = scmp.eq.s32.totalorder %s27, 0
      %p54 = por %p52, %p53
      %s56 = sadd.s32 %s55, 1
      %p59 = scmp.eq.s32.totalorder %s21, 3
      %p60 = scmp.ne.s32.totalorder %s55, %s57
      %p61 = scmp.eq.s32.totalorder %s21, 0
      %p62 = por %p60, %p61
      %p63 = scmp.ne.s32.totalorder %s55, %s57
      %p64 = scmp.eq.s32.totalorder %s26, 3
      %p65 = por %p63, %p64
      %p66 = scmp.ne.s32.totalorder %s57, %s58
      %p67 = scmp.eq.s32.totalorder %s26, 0
      %p68 = por %p66, %p67
      %p69 = scmp.ne.s32.totalorder %s57, %s58
      %p70 = scmp.eq.s32.totalorder %s27, 3
      %p71 = por %p69, %p70
      %p73 = scmp.ne.s32.totalorder %s58, %s72
      %p74 = scmp.eq.s32.totalorder %s27, 0
      %p75 = por %p73, %p74
      %s77 = sadd.s32 %s76, 1
      %p80 = scmp.eq.s32.totalorder %s21, 3
      %p81 = scmp.ne.s32.totalorder %s76, %s78
      %p82 = scmp.eq.s32.totalorder %s21, 0
      %p83 = por %p81, %p82
      %p84 = scmp.ne.s32.totalorder %s76, %s78
      %p85 = scmp.eq.s32.totalorder %s26, 3
      %p86 = por %p84, %p85
      %p87 = scmp.ne.s32.totalorder %s78, %s79
      %p88 = scmp.eq.s32.totalorder %s26, 0
      %p89 = por %p87, %p88
      %p90 = scmp.ne.s32.totalorder %s78, %s79
      %p91 = scmp.eq.s32.totalorder %s27, 3
      %p92 = por %p90, %p91
      %p94 = scmp.ne.s32.totalorder %s79, %s93
      %p95 = scmp.eq.s32.totalorder %s27, 0
      %p96 = por %p94, %p95
      %s97 = ssub.s32 %s21, %s28
      %p98 = scmp.eq.s32.totalorder %s97, 0
      %s100 = sadd.s32 %s99, 1
      %s101 = scalar_select %p98, %s99, %s100
      %p104 = pneg %p98
      %p105 = scmp.eq.s32.totalorder %s21, 3
      %p106 = por %p104, %p105
      %p107 = scmp.ne.s32.totalorder %s99, %s102
      %p108 = scmp.eq.s32.totalorder %s21, 0
      %p109 = por %p107, %p108
      %p110 = scmp.ne.s32.totalorder %s99, %s102
      %p111 = scmp.eq.s32.totalorder %s26, 3
      %p112 = por %p110, %p111
      %p113 = scmp.ne.s32.totalorder %s102, %s103
      %p114 = scmp.eq.s32.totalorder %s26, 0
      %p115 = por %p113, %p114
      %p116 = scmp.ne.s32.totalorder %s102, %s103
      %p117 = scmp.eq.s32.totalorder %s27, 3
      %p118 = por %p116, %p117
      %p120 = scmp.ne.s32.totalorder %s103, %s119
      %p121 = scmp.eq.s32.totalorder %s27, 0
      %p122 = por %p120, %p121
      %s123 = ssub.s32 %s21, %s28
      %p124 = scmp.eq.s32.totalorder %s123, 0
      %s126 = sadd.s32 %s125, 1
      %s127 = scalar_select %p124, %s125, %s126
      %p130 = pneg %p124
      %p131 = scmp.eq.s32.totalorder %s21, 3
      %p132 = por %p130, %p131
      %p133 = scmp.ne.s32.totalorder %s125, %s128
      %p134 = scmp.eq.s32.totalorder %s21, 0
      %p135 = por %p133, %p134
      %p136 = scmp.ne.s32.totalorder %s125, %s128
      %p137 = scmp.eq.s32.totalorder %s26, 3
      %p138 = por %p136, %p137
      %p139 = scmp.ne.s32.totalorder %s128, %s129
      %p140 = scmp.eq.s32.totalorder %s26, 0
      %p141 = por %p139, %p140
      %p142 = scmp.ne.s32.totalorder %s128, %s129
      %p143 = scmp.eq.s32.totalorder %s27, 3
      %p144 = por %p142, %p143
      %p146 = scmp.ne.s32.totalorder %s129, %s145
      %p147 = scmp.eq.s32.totalorder %s27, 0
      %p148 = por %p146, %p147
      %p149 = scmp.le.s32.totalorder 1, %s21
      %p150 = scmp.lt.s32.totalorder %s21, 5
      %p151 = pnand %p149, %p150
      %p152 = pneg %p151
      // Predicated region
      $region9: #{tpu_custom_call.1} parent=5 // pred_check
        _
      $region10: #{tpu_custom_call.1} parent=5 // pred_check_branch
        %154 = sbr.rel (%p151) target = $region12
      $region11: #{tpu_custom_call.1} parent=5 // pred_region
        %s155 = ssub.s32 %s21, 1
        // Predicated region
        $region13: #{tpu_custom_call.1} parent=11 // pred_check
          %p156 = pneg %p68
        $region14: #{tpu_custom_call.1} parent=11 // pred_check_branch
          %158 = sbr.rel (%p156) target = $region16
        $region15: #{tpu_custom_call.1} parent=11 // pred_region
          %160 = vsyncadd [#allocation6], 0
          %s162 = sshll.u32 %s1, 4
          %s163 = int_to_ptr.hbm [resolvable:$true] %s162
          %s164 = sshll.u32 [#allocation5], 4
          %s165 = int_to_ptr.vmem [resolvable:$true] %s164
          %167 = dma.hbm_to_vmem [thread:$0]  %s163, 16, %s165, [#allocation6]
        $region16: #{tpu_custom_call.1} parent=11 // pred_fallthru
          _
        // Predicated region
        $region17: #{tpu_custom_call.1} parent=11 // pred_check
          %p168 = pneg %p89
        $region18: #{tpu_custom_call.1} parent=11 // pred_check_branch
          %170 = sbr.rel (%p168) target = $region20
        $region19: #{tpu_custom_call.1} parent=11 // pred_region
          _
        $region20: #{tpu_custom_call.1} parent=11 // pred_fallthru
          _
      $region12: #{tpu_custom_call.1} parent=5 // pred_fallthru
        _
      %p171 = scmp.lt.s32.totalorder %s21, 4
      // Predicated region
      $region21: #{tpu_custom_call.1} parent=5 // pred_check
        %p172 = pneg %p171
      $region22: #{tpu_custom_call.1} parent=5 // pred_check_branch
        %174 = sbr.rel (%p172) target = $region24
      $region23: #{tpu_custom_call.1} parent=5 // pred_region
        // Predicated region
        $region25: #{tpu_custom_call.1} parent=23 // pred_check
          %p175 = pneg %p41
        $region26: #{tpu_custom_call.1} parent=23 // pred_check_branch
          %177 = sbr.rel (%p175) target = $region28
        $region27: #{tpu_custom_call.1} parent=23 // pred_region
          %s178 = sand.u32 %s31, 1
          %s179 = scalar_lea.sflag [#allocation3], %s178
          %s180 = sand.u32 %s31, 1
          %s181 = smul.addr %s180, 8
          %s182 = scalar_lea.vmem [#allocation2], %s181
          %s183 = smul.u32 2, %s21
          %185 = vsyncadd %s179, 0
          %s186 = smul.addr %s183, 4
          %s187 = scalar_lea.hbm %s0, %s186
          %s188 = sshll.u32 %s187, 4
          %s189 = int_to_ptr.hbm [resolvable:$true] %s188
          %s190 = sshll.u32 %s182, 4
          %s191 = int_to_ptr.vmem [resolvable:$true] %s190
          %196 = dma.hbm_to_vmem [thread:$0]  %s189, 128, %s191, %s179, 64, 64, 4
        $region28: #{tpu_custom_call.1} parent=23 // pred_fallthru
          _
      $region24: #{tpu_custom_call.1} parent=5 // pred_fallthru
        _
      %p197 = scmp.le.s32.totalorder 1, %s21
      %p198 = scmp.lt.s32.totalorder %s21, 5
      %p199 = pnand %p197, %p198
      %p200 = pneg %p199
      // Predicated region
      $region29: #{tpu_custom_call.1} parent=5 // pred_check
        _
      $region30: #{tpu_custom_call.1} parent=5 // pred_check_branch
        %202 = sbr.rel (%p199) target = $region32
      $region31: #{tpu_custom_call.1} parent=5 // pred_region
        %s203 = ssub.s32 %s21, 1
        %s204 = sand.u32 %s34, 1
        %s205 = scalar_lea.sflag [#allocation3], %s204
        %s206 = sand.u32 %s34, 1
        %s207 = smul.addr %s206, 8
        %s208 = scalar_lea.vmem [#allocation2], %s207
        // Predicated region
        $region33: #{tpu_custom_call.1} parent=31 // pred_check
          %p209 = pneg %p47
        $region34: #{tpu_custom_call.1} parent=31 // pred_check_branch
          %211 = sbr.rel (%p209) target = $region36
        $region35: #{tpu_custom_call.1} parent=31 // pred_region
          %213 = dma.done %s205, 128
        $region36: #{tpu_custom_call.1} parent=31 // pred_fallthru
          _
        // Predicated region
        $region37: #{tpu_custom_call.1} parent=31 // pred_check
          %p214 = pneg %p68
        $region38: #{tpu_custom_call.1} parent=31 // pred_check_branch
          %216 = sbr.rel (%p214) target = $region40
        $region39: #{tpu_custom_call.1} parent=31 // pred_region
          %218 = dma.done [#allocation6], 16
        $region40: #{tpu_custom_call.1} parent=31 // pred_fallthru
          _
        %s219 = sand.u32 %s34, 1
        %s220 = scalar_lea.sflag [#allocation3], %s219
        %s221 = sand.u32 %s34, 1
        %s222 = smul.addr %s221, 8
        %s223 = scalar_lea.vmem [#allocation2], %s222
        %p224 = pneg %p47
        %p225 = pneg %p44
        %p226 = pneg %p68
        %p227 = pneg %p65
        %p228 = pneg %p89
        %p229 = pneg %p86
        %p230 = pneg %p115
        %p231 = pneg %p112
        %s232 = sand.u32 %s102, 1
        %s233 = scalar_lea.sflag [#allocation4], %s232
        %s234 = sand.u32 %s102, 1
        %s235 = smul.addr %s234, 8
        %s236 = scalar_lea.vmem [#allocation7], %s235
        %p237 = pneg %p141
        %p238 = pneg %p138
        %s239 = sand.u32 %s128, 1
        %s240 = scalar_lea.sflag [#allocation9], %s239
        %s241 = sand.u32 %s128, 1
        %s242 = smul.addr %s241, 4
        %s243 = scalar_lea.vmem [#allocation8], %s242
        %s244 = smul.u32 2, %s26
        %s245 = smul.u32 2, %s26
        %s246 = smul.u32 2, %s26
        %v247 = vld [vmem:[%s208] sm:$0xf]
        %v248 = vld [vmem:[%s208 + $0x4] sm:$0xf]
        %vm249 = vcmask 1043456
        %v250 = vsel %vm249, %v247, 0.0
        %v251 = vrot.slane %v250, 4
        %v252 = vadd.f32 %v250, %v251
        %v253 = vrot.slane %v252, 2
        %v254 = vadd.f32 %v252, %v253
        %v255 = vrot.slane %v254, 1
        %v256 = vadd.f32 %v254, %v255
        %v257 = vsel %vm249, %v248, 0.0
        %v258 = vrot.slane %v257, 4
        %v259 = vadd.f32 %v257, %v258
        %v260 = vrot.slane %v259, 2
        %v261 = vadd.f32 %v259, %v260
        %v262 = vrot.slane %v261, 1
        %v263 = vadd.f32 %v261, %v262
        %264 = vrot.lane.b32.xlu0 %v256, 32
        %v265 = vpop.permute.xlu0 %264
        %266 = vrot.lane.b32.xlu0 %v263, 32
        %v267 = vpop.permute.xlu0 %266
        %v268 = vadd.f32 %v256, %v265
        %v269 = vadd.f32 %v263, %v267
        %270 = vrot.lane.b32.xlu0 %v268, 64
        %v271 = vpop.permute.xlu0 %270
        %272 = vrot.lane.b32.xlu0 %v269, 64
        %v273 = vpop.permute.xlu0 %272
        %v274 = vadd.f32 %v268, %v271
        %v275 = vadd.f32 %v269, %v273
        %v276 = vmul.f32 %v274, 0.0625
        %v277 = vmul.f32 %v275, 0.0625
        %v278 = vperm.slane %v276, 0
        %v279 = vperm.slane %v277, 0
        %v280 = vsub.f32 %v247, %v278
        %v281 = vsub.f32 %v248, %v279
        %v282 = vmul.f32 %v280, %v280
        %v283 = vmul.f32 %v281, %v281
        %v284 = vsel %vm249, %v282, 0.0
        %v285 = vrot.slane %v284, 4
        %v286 = vadd.f32 %v284, %v285
        %v287 = vrot.slane %v286, 2
        %v288 = vadd.f32 %v286, %v287
        %v289 = vrot.slane %v288, 1
        %v290 = vadd.f32 %v288, %v289
        %v291 = vsel %vm249, %v283, 0.0
        %v292 = vrot.slane %v291, 4
        %v293 = vadd.f32 %v291, %v292
        %v294 = vrot.slane %v293, 2
        %v295 = vadd.f32 %v293, %v294
        %v296 = vrot.slane %v295, 1
        %v297 = vadd.f32 %v295, %v296
        %298 = vrot.lane.b32.xlu0 %v290, 32
        %v299 = vpop.permute.xlu0 %298
        %300 = vrot.lane.b32.xlu0 %v297, 32
        %v301 = vpop.permute.xlu0 %300
        %v302 = vadd.f32 %v290, %v299
        %v303 = vadd.f32 %v297, %v301
        %304 = vrot.lane.b32.xlu0 %v302, 64
        %v305 = vpop.permute.xlu0 %304
        %306 = vrot.lane.b32.xlu0 %v303, 64
        %v307 = vpop.permute.xlu0 %306
        %v308 = vadd.f32 %v302, %v305
        %v309 = vadd.f32 %v303, %v307
        %v310 = vmul.f32 %v308, 0.06666667
        %v311 = vmul.f32 %v309, 0.06666667
        %v312 = vrsqrt.pop %v310
        %v313 = vmul.f32 %v312, %v310
        %v314 = vmul.f32 %v313, %v312
        %v315 = vmul.f32 0.5, %v314
        %v316 = vsub.f32 1.5, %v315
        %v317 = vmul.f32 %v312, %v316
        %v318 = vmul.f32 %v310, %v317
        %vm319 = vcmp.eq.f32.partialorder %v310, inf
        %v320 = vsel %vm319, %v310, %v318
        %vm321 = vcmp.eq.f32.partialorder %v310, 0.0
        %v322 = vand.u32 %v310, 2147483648
        %v323 = vsel %vm321, %v322, %v320
        %v324 = vrsqrt.pop %v311
        %v325 = vmul.f32 %v324, %v311
        %v326 = vmul.f32 %v325, %v324
        %v327 = vmul.f32 0.5, %v326
        %v328 = vsub.f32 1.5, %v327
        %v329 = vmul.f32 %v324, %v328
        %v330 = vmul.f32 %v311, %v329
        %vm331 = vcmp.eq.f32.partialorder %v311, inf
        %v332 = vsel %vm331, %v311, %v330
        %vm333 = vcmp.eq.f32.partialorder %v311, 0.0
        %v334 = vand.u32 %v311, 2147483648
        %v335 = vsel %vm333, %v334, %v332
        %v336 = vadd.f32 %v323, 1e-05
        %v337 = vadd.f32 %v335, 1e-05
        %v338 = vrcp.pop %v336
        %v339 = vmul.f32 %v336, %v338
        %v340 = vsub.f32 1.0, %v339
        %v341 = vmul.f32 %v338, %v340
        %v342 = vadd.f32 %v338, %v341
        %vm343 = vweird.f32 %v336
        %vm344 = vweird.f32 %v338
        %vm345 = vmor %vm343, %vm344
        %v346 = vsel %vm345, %v338, %v342
        %v347 = vand.u32 2147483647, %v336
        %vm348 = vcmp.eq.f32.partialorder %v347, 8.507059e+37
        %v349 = vand.u32 %v336, 2147483648
        %v350 = vor.u32 1.1754944e-38, %v349
        %v351 = vsel %vm348, %v350, %v346
        %v352 = vrcp.pop %v337
        %v353 = vmul.f32 %v337, %v352
        %v354 = vsub.f32 1.0, %v353
        %v355 = vmul.f32 %v352, %v354
        %v356 = vadd.f32 %v352, %v355
        %vm357 = vweird.f32 %v337
        %vm358 = vweird.f32 %v352
        %vm359 = vmor %vm357, %vm358
        %v360 = vsel %vm359, %v352, %v356
        %v361 = vand.u32 2147483647, %v337
        %vm362 = vcmp.eq.f32.partialorder %v361, 8.507059e+37
        %v363 = vand.u32 %v337, 2147483648
        %v364 = vor.u32 1.1754944e-38, %v363
        %v365 = vsel %vm362, %v364, %v360
        %v366 = vld [vmem:[#allocation5] sm:$0x1]
        %v367 = vmul.f32 %v366, %v351
        %v368 = vmul.f32 %v366, %v365
        %v369 = vld [vmem:[%s2] sm:$0x1]
        %v370 = vmul.f32 %v276, %v367
        %v371 = vmul.f32 %v277, %v368
        %v372 = vsub.f32 %v369, %v370
        %v373 = vsub.f32 %v369, %v371
        %v376 = vperm.slane %v367, 0
        %v377 = vperm.slane %v368, 0
        %v380 = vmul.f32 %v247, %v376
        %v381 = vmul.f32 %v248, %v377
        %v384 = vperm.slane %v372, 0
        %v385 = vperm.slane %v373, 0
        %v388 = vadd.f32 %v380, %v384
        %v389 = vadd.f32 %v381, %v385
        %390 = vst [vmem:[%s236] sm:$0xf] %v388
        %391 = vst [vmem:[%s236 + $0x4] sm:$0xf] %v389
        %v394 = vrot.slane %v336, 7
        %v395 = vrot.slane %v337, 7
        %vm398 = vcmask 1040384
        %v399 = vsel %vm398, %v276, %v394
        %v400 = vsel %vm398, %v277, %v395
        %401 = vst [vmem:[%s243] sm:$0x3] %v399
        %402 = vst [vmem:[%s243 + $0x2] sm:$0x3] %v400
        %s403 = sand.u32 %s102, 1
        %s404 = scalar_lea.sflag [#allocation4], %s403
        %s405 = sand.u32 %s102, 1
        %s406 = smul.addr %s405, 8
        %s407 = scalar_lea.vmem [#allocation7], %s406
        %s408 = sand.u32 %s128, 1
        %s409 = scalar_lea.sflag [#allocation9], %s408
        %s410 = sand.u32 %s128, 1
        %s411 = smul.addr %s410, 4
        %s412 = scalar_lea.vmem [#allocation8], %s411
        // Predicated region
        $region41: #{tpu_custom_call.1} parent=31 // pred_check
          %p413 = pneg %p112
        $region42: #{tpu_custom_call.1} parent=31 // pred_check_branch
          %415 = sbr.rel (%p413) target = $region44
        $region43: #{tpu_custom_call.1} parent=31 // pred_region
          %s416 = smul.u32 2, %s26
          %418 = vsyncadd %s404, 0
          %s419 = smul.addr %s416, 4
          %s420 = scalar_lea.hbm %s3, %s419
          %s421 = sshll.u32 %s407, 4
          %s422 = int_to_ptr.vmem [resolvable:$true] %s421
          %s423 = sshll.u32 %s420, 4
          %s424 = int_to_ptr.hbm [resolvable:$true] %s423
          %429 = dma.vmem_to_hbm [thread:$0]  %s422, 128, %s424, %s404, 64, 64, 4
        $region44: #{tpu_custom_call.1} parent=31 // pred_fallthru
          _
        // Predicated region
        $region45: #{tpu_custom_call.1} parent=31 // pred_check
          %p430 = pneg %p138
        $region46: #{tpu_custom_call.1} parent=31 // pred_check_branch
          %432 = sbr.rel (%p430) target = $region48
        $region47: #{tpu_custom_call.1} parent=31 // pred_region
          %s433 = smul.u32 2, %s26
          %435 = vsyncadd %s409, 0
          %s436 = smul.addr %s433, 2
          %s437 = scalar_lea.hbm %s4, %s436
          %s438 = sshll.u32 %s412, 4
          %s439 = int_to_ptr.vmem [resolvable:$true] %s438
          %s440 = sshll.u32 %s437, 4
          %s441 = int_to_ptr.hbm [resolvable:$true] %s440
          %446 = dma.vmem_to_hbm [thread:$0]  %s439, 64, %s441, %s409, 32, 32, 2
        $region48: #{tpu_custom_call.1} parent=31 // pred_fallthru
          _
      $region32: #{tpu_custom_call.1} parent=5 // pred_fallthru
        _
      %p447 = scmp.le.s32.totalorder 2, %s21
      // Predicated region
      $region49: #{tpu_custom_call.1} parent=5 // pred_check
        %p448 = pneg %p447
      $region50: #{tpu_custom_call.1} parent=5 // pred_check_branch
        %450 = sbr.rel (%p448) target = $region52
      $region51: #{tpu_custom_call.1} parent=5 // pred_region
        %s451 = ssub.s32 %s21, 2
        // Predicated region
        $region53: #{tpu_custom_call.1} parent=51 // pred_check
          %p452 = pneg %p118
        $region54: #{tpu_custom_call.1} parent=51 // pred_check_branch
          %454 = sbr.rel (%p452) target = $region56
        $region55: #{tpu_custom_call.1} parent=51 // pred_region
          %s455 = sand.u32 %s103, 1
          %s456 = scalar_lea.sflag [#allocation4], %s455
          %s457 = sand.u32 %s103, 1
          %s458 = smul.addr %s457, 8
          %s459 = scalar_lea.vmem [#allocation7], %s458
          %461 = dma.done %s456, 128
        $region56: #{tpu_custom_call.1} parent=51 // pred_fallthru
          _
        // Predicated region
        $region57: #{tpu_custom_call.1} parent=51 // pred_check
          %p462 = pneg %p144
        $region58: #{tpu_custom_call.1} parent=51 // pred_check_branch
          %464 = sbr.rel (%p462) target = $region60
        $region59: #{tpu_custom_call.1} parent=51 // pred_region
          %s465 = sand.u32 %s129, 1
          %s466 = scalar_lea.sflag [#allocation9], %s465
          %s467 = sand.u32 %s129, 1
          %s468 = smul.addr %s467, 4
          %s469 = scalar_lea.vmem [#allocation8], %s468
          %471 = dma.done %s466, 64
        $region60: #{tpu_custom_call.1} parent=51 // pred_fallthru
          _
      $region52: #{tpu_custom_call.1} parent=5 // pred_fallthru
        _
    $region6: #{tpu_custom_call.1} parent=1 // loop_footer
      %s25 = sadd.s32 1, %s21
    $region7: #{tpu_custom_call.1} parent=1 // loop_footer_branch
      %20 = sbr.rel target = $region3
    $region8: #{tpu_custom_call.1} parent=1 // loop_exit
      _
    %472 = vsyncpa [#allocation3], 1
    %s473 = scalar_lea.sflag [#allocation3], 1
    %474 = vsyncpa %s473, 1
    %475 = vsyncpa [#allocation6], 1
    %476 = vsyncpa [#allocation4], 1
    %s477 = scalar_lea.sflag [#allocation4], 1
    %478 = vsyncpa %s477, 1
    %479 = vsyncpa [#allocation9], 1
    %s480 = scalar_lea.sflag [#allocation9], 1
    %481 = vsyncpa %s480, 1

</llo_original>
